<compile_context>
chip_gen: v5e
topology: v5e:2x2
jax: 0.10.0
libtpu: 0.0.40
codegen_flags: <defaults>
</compile_context>

<pallas_src>
import functools

import jax
import jax.numpy as jnp
from jax.experimental import pallas as pl
from jax.experimental.pallas import tpu as pltpu


def _loss1_kernel(rep_a_ref, rep_b_ref, w_ref, bias_ref, lbl_ref, out_ref, *,
                  total_rows):
    pid = pl.program_id(0)
    tb = out_ref.shape[0]

    # Embeddings in their native dtype (no full-tile f32 materialization).
    a = rep_a_ref[...]
    b = rep_b_ref[...]
    diff = jnp.abs(a - b)
    # TODO(synk): on v5e the VPU has no bf16 ALU; if feeding bf16 reps there,
    # cast only the diff path to f32 (a/b feed the MXU directly in bf16).

    # TODO(synk): nn.Dropout(p=0.1) is identity here (eval-mode semantics);
    # training parity would need pltpu.prng_seed + pltpu.prng_random_bits.

    # Linear([u, v, |u-v|]) against the lane-dense (3, L, D) slab.
    # dot_general contracts the D (lane) axis of both operands -> (tb, L),
    # accumulated in f32 on the MXU.
    dn = (((1,), (1,)), ((), ()))
    logits = (
        jax.lax.dot_general(a, w_ref[0], dn, preferred_element_type=jnp.float32)
        + jax.lax.dot_general(b, w_ref[1], dn, preferred_element_type=jnp.float32)
        + jax.lax.dot_general(diff, w_ref[2], dn, preferred_element_type=jnp.float32)
        + bias_ref[...].astype(jnp.float32)
    )                                                          # (tb, L) f32

    # Cross-entropy with integer labels (no one-hot input).
    # NOTE: labels are assumed to lie in [0, L); ignore_index is not handled.
    m = jnp.max(logits, axis=-1, keepdims=True)
    lse = m + jnp.log(jnp.sum(jnp.exp(logits - m), axis=-1, keepdims=True))
    col = jax.lax.broadcasted_iota(jnp.int32, logits.shape, 1)
    picked = jnp.sum(jnp.where(col == lbl_ref[...], logits, 0.0),
                     axis=-1, keepdims=True)
    per_example = lse - picked                                 # (tb, 1)

    # Mask ragged rows of the final batch tile (applied to per_example, after
    # the softmax math, so any padded-row NaN/Inf cannot leak).
    row = jax.lax.broadcasted_iota(jnp.int32, per_example.shape, 0) + pid * tb
    per_example = jnp.where(row < total_rows, per_example, 0.0)

    # Per-tile rows go straight out; the mean reduction happens outside.
    out_ref[...] = per_example


def prepare_classifier_params(weight, bias, dtype=None):
    """ONE-TIME packing of the Linear(3D -> L) parameters.

    weight: (L, 3*D), bias: (L,)  ->  (w3, bias2d) with
      w3     : (3, L, D)  lane-dense slab, w3[0]=W_u, w3[1]=W_v, w3[2]=W_|u-v|
      bias2d : (1, L)     f32
    Call this once at model init, not per training step.  Pass dtype=bf16 to
    halve weight HBM/VMEM footprint (f32 MXU accumulation keeps accuracy).
    """
    L, threeD = weight.shape
    D = threeD // 3
    if dtype is None:
        dtype = weight.dtype
    w3 = jnp.asarray(weight, dtype).reshape(L, 3, D).transpose(1, 0, 2)
    bias2d = jnp.asarray(bias, jnp.float32).reshape(1, L)
    return w3, bias2d


def loss1_forward(rep_a, rep_b, labels, w3, bias2d, *, tile_b=None):
    """rep_a, rep_b: (B, D) f32/bf16; labels: (B,) int; w3: (3, L, D); bias2d: (1, L)."""
    B, D = rep_a.shape
    L = w3.shape[1]
    assert w3.shape == (3, L, D), "use prepare_classifier_params()"

    # 512-row tiles: ~85% of HBM roofline and within the 16 MiB (v5e) /
    # 32 MiB (v7x) default scoped VMEM even for f32 D=768 inputs with
    # double-buffering.  bf16 inputs can use tile_b=1024.
    if tile_b is None:
        tile_b = min(B, 512)
    if tile_b != B:
        tile_b = max(8, (tile_b // 8) * 8)
    nb = pl.cdiv(B, tile_b)

    labels2d = labels.astype(jnp.int32).reshape(B, 1)   # (B, 1) int32

    kernel = functools.partial(_loss1_kernel, total_rows=B)

    per_example = pl.pallas_call(
        kernel,
        out_shape=jax.ShapeDtypeStruct((B, 1), jnp.float32),
        grid=(nb,),
        in_specs=[
            pl.BlockSpec((tile_b, D), lambda i: (i, 0)),      # rep_a
            pl.BlockSpec((tile_b, D), lambda i: (i, 0)),      # rep_b
            pl.BlockSpec((3, L, D), lambda i: (0, 0, 0)),     # packed weights
            pl.BlockSpec((1, L), lambda i: (0, 0)),           # bias
            pl.BlockSpec((tile_b, 1), lambda i: (i, 0)),      # int labels
        ],
        out_specs=pl.BlockSpec((tile_b, 1), lambda i: (i, 0)),  # per-row loss
        compiler_params=pltpu.CompilerParams(
            dimension_semantics=("parallel",)),
    )(rep_a, rep_b, w3, bias2d, labels2d)

    # Tiny (B,) reduction outside the kernel (masked rows are already 0).
    return jnp.sum(per_example) * (1.0 / B)


def _reference(rep_a, rep_b, weight, bias, labels):
    feats = jnp.concatenate([rep_a, rep_b, jnp.abs(rep_a - rep_b)], axis=1)
    logits = feats @ weight.T + bias
    logp = jax.nn.log_softmax(logits, axis=-1)
    return -jnp.mean(jnp.take_along_axis(logp, labels[:, None], axis=1))


if __name__ == "__main__":
    key = jax.random.PRNGKey(0)
    B, D, L = 8, 32, 3          # batch, sentence_embedding_dimension, num_labels
    k1, k2, k3, k4, k5 = jax.random.split(key, 5)

    rep_a = jax.random.normal(k1, (B, D), dtype=jnp.float32)
    rep_b = jax.random.normal(k2, (B, D), dtype=jnp.float32)

    # Deterministic classifier init: Linear(3*D -> L) (weight + bias).
    fan_in = 3 * D
    bound = 1.0 / (fan_in ** 0.5)
    weight = jax.random.uniform(k3, (L, 3 * D), minval=-bound, maxval=bound,
                                dtype=jnp.float32)
    bias = jax.random.uniform(k4, (L,), minval=-bound, maxval=bound,
                              dtype=jnp.float32)
    labels = jax.random.randint(k5, (B,), 0, L, dtype=jnp.int32)

    # One-time parameter packing (hoisted out of the per-step path).
    w3, bias2d = prepare_classifier_params(weight, bias)

    loss = loss1_forward(rep_a, rep_b, labels, w3, bias2d)
    loss = jax.block_until_ready(loss)

    ref = _reference(rep_a, rep_b, weight, bias, labels)
    assert jnp.allclose(loss, ref, atol=1e-5, rtol=1e-5), (loss, ref)
    print("KERNEL_OK")
</pallas_src>

<mosaic_0001>
module attributes {stable_mosaic.version = 11 : i64} {
  func.func @_loss1_kernel(%arg0: i32, %arg1: memref<8x32xf32, #tpu.memory_space<vmem>>, %arg2: memref<8x32xf32, #tpu.memory_space<vmem>>, %arg3: memref<3x3x32xf32, #tpu.memory_space<vmem>>, %arg4: memref<1x3xf32, #tpu.memory_space<vmem>>, %arg5: memref<8x1xi32, #tpu.memory_space<vmem>>, %arg6: memref<8x1xf32, #tpu.memory_space<vmem>>) attributes {dimension_semantics = [#tpu.dimension_semantics<parallel>], iteration_bounds = array<i64: 1>, scalar_prefetch = 0 : i64, scratch_operands = 0 : i64, tpu.core_type = #tpu.core_type<tc>, window_params = [{transform_indices = @transform_0, window_bounds = array<i64: 8, 32>}, {transform_indices = @transform_1, window_bounds = array<i64: 8, 32>}, {pipeline_mode = #tpu.pipeline_mode<synchronous>, transform_indices = @transform_2, window_bounds = array<i64: 3, 3, 32>}, {pipeline_mode = #tpu.pipeline_mode<synchronous>, transform_indices = @transform_3, window_bounds = array<i64: 1, 3>}, {transform_indices = @transform_4, window_bounds = array<i64: 8, 1>}, {transform_indices = @transform_5, window_bounds = array<i64: 8, 1>}]} {
    %c0 = arith.constant 0 : index
    %c0_0 = arith.constant 0 : index
    %0 = vector.load %arg1[%c0, %c0_0] : memref<8x32xf32, #tpu.memory_space<vmem>>, vector<8x32xf32>
    %c0_1 = arith.constant 0 : index
    %c0_2 = arith.constant 0 : index
    %1 = vector.load %arg2[%c0_1, %c0_2] : memref<8x32xf32, #tpu.memory_space<vmem>>, vector<8x32xf32>
    %2 = arith.subf %0, %1 : vector<8x32xf32>
    %3 = math.absf %2 : vector<8x32xf32>
    %c0_3 = arith.constant 0 : index
    %c0_4 = arith.constant 0 : index
    %c0_5 = arith.constant 0 : index
    %4 = vector.load %arg3[%c0_3, %c0_4, %c0_5] : memref<3x3x32xf32, #tpu.memory_space<vmem>>, vector<1x3x32xf32>
    %5 = vector.shape_cast %4 : vector<1x3x32xf32> to vector<3x32xf32>
    %cst = arith.constant dense<0.000000e+00> : vector<8x3xf32>
    %6 = tpu.matmul %0, %5, %cst {dimension_numbers = #tpu.dot_dimension_numbers<[1], [1], [0], [0], [0, 0, 1, 0], [], []>} : vector<8x32xf32>, vector<3x32xf32>, vector<8x3xf32> -> vector<8x3xf32>
    %c1 = arith.constant 1 : index
    %c0_6 = arith.constant 0 : index
    %c0_7 = arith.constant 0 : index
    %7 = vector.load %arg3[%c1, %c0_6, %c0_7] : memref<3x3x32xf32, #tpu.memory_space<vmem>>, vector<1x3x32xf32>
    %8 = vector.shape_cast %7 : vector<1x3x32xf32> to vector<3x32xf32>
    %cst_8 = arith.constant dense<0.000000e+00> : vector<8x3xf32>
    %9 = tpu.matmul %1, %8, %cst_8 {dimension_numbers = #tpu.dot_dimension_numbers<[1], [1], [0], [0], [0, 0, 1, 0], [], []>} : vector<8x32xf32>, vector<3x32xf32>, vector<8x3xf32> -> vector<8x3xf32>
    %10 = arith.addf %6, %9 : vector<8x3xf32>
    %c2 = arith.constant 2 : index
    %c0_9 = arith.constant 0 : index
    %c0_10 = arith.constant 0 : index
    %11 = vector.load %arg3[%c2, %c0_9, %c0_10] : memref<3x3x32xf32, #tpu.memory_space<vmem>>, vector<1x3x32xf32>
    %12 = vector.shape_cast %11 : vector<1x3x32xf32> to vector<3x32xf32>
    %cst_11 = arith.constant dense<0.000000e+00> : vector<8x3xf32>
    %13 = tpu.matmul %3, %12, %cst_11 {dimension_numbers = #tpu.dot_dimension_numbers<[1], [1], [0], [0], [0, 0, 1, 0], [], []>} : vector<8x32xf32>, vector<3x32xf32>, vector<8x3xf32> -> vector<8x3xf32>
    %14 = arith.addf %10, %13 : vector<8x3xf32>
    %c0_12 = arith.constant 0 : index
    %c0_13 = arith.constant 0 : index
    %15 = vector.load %arg4[%c0_12, %c0_13] : memref<1x3xf32, #tpu.memory_space<vmem>>, vector<1x3xf32>
    %16 = vector.broadcast %15 : vector<1x3xf32> to vector<8x3xf32>
    %17 = arith.addf %14, %16 : vector<8x3xf32>
    %cst_14 = arith.constant dense<0xFF800000> : vector<8xf32>
    %18 = vector.multi_reduction <maximumf>, %17, %cst_14 [1] : vector<8x3xf32> to vector<8xf32>
    %19 = vector.shape_cast %18 : vector<8xf32> to vector<8x1xf32>
    %20 = vector.broadcast %19 : vector<8x1xf32> to vector<8x3xf32>
    %21 = arith.subf %17, %20 : vector<8x3xf32>
    %22 = math.exp %21 : vector<8x3xf32>
    %cst_15 = arith.constant dense<0.000000e+00> : vector<8xf32>
    %23 = vector.multi_reduction <add>, %22, %cst_15 [1] : vector<8x3xf32> to vector<8xf32>
    %24 = vector.shape_cast %23 : vector<8xf32> to vector<8x1xf32>
    %25 = math.log %24 : vector<8x1xf32>
    %26 = arith.addf %19, %25 : vector<8x1xf32>
    %27 = tpu.iota {dimensions = array<i32: 1>} : vector<8x3xi32>
    %c0_16 = arith.constant 0 : index
    %c0_17 = arith.constant 0 : index
    %28 = vector.load %arg5[%c0_16, %c0_17] : memref<8x1xi32, #tpu.memory_space<vmem>>, vector<8x1xi32>
    %29 = vector.broadcast %28 : vector<8x1xi32> to vector<8x3xi32>
    %30 = arith.cmpi eq, %27, %29 : vector<8x3xi32>
    %cst_18 = arith.constant 0.000000e+00 : f32
    %31 = vector.broadcast %cst_18 : f32 to vector<8x3xf32>
    %32 = arith.select %30, %17, %31 : vector<8x3xi1>, vector<8x3xf32>
    %cst_19 = arith.constant dense<0.000000e+00> : vector<8xf32>
    %33 = vector.multi_reduction <add>, %32, %cst_19 [1] : vector<8x3xf32> to vector<8xf32>
    %34 = vector.shape_cast %33 : vector<8xf32> to vector<8x1xf32>
    %35 = arith.subf %26, %34 : vector<8x1xf32>
    %36 = tpu.iota {dimensions = array<i32: 0>} : vector<8x1xi32>
    %c8_i32 = arith.constant 8 : i32
    %37 = arith.muli %arg0, %c8_i32 : i32
    %38 = vector.broadcast %37 : i32 to vector<8x1xi32>
    %39 = arith.addi %36, %38 : vector<8x1xi32>
    %c8_i32_20 = arith.constant 8 : i32
    %40 = vector.broadcast %c8_i32_20 : i32 to vector<8x1xi32>
    %41 = arith.cmpi slt, %39, %40 : vector<8x1xi32>
    %cst_21 = arith.constant 0.000000e+00 : f32
    %42 = vector.broadcast %cst_21 : f32 to vector<8x1xf32>
    %43 = arith.select %41, %35, %42 : vector<8x1xi1>, vector<8x1xf32>
    %c0_22 = arith.constant 0 : index
    %c0_23 = arith.constant 0 : index
    %44 = vector.load %arg6[%c0_22, %c0_23] : memref<8x1xf32, #tpu.memory_space<vmem>>, vector<8x1xf32>
    tpu.vector_store %arg6[%c0_22, %c0_23], %43 {strides = array<i32>} : memref<8x1xf32, #tpu.memory_space<vmem>>, vector<8x1xf32>,
    return
  }
  func.func @transform_0(%arg0: i32) -> (i32, i32) {
    %c0_i32 = arith.constant 0 : i32
    %c0_i32_0 = arith.constant 0 : i32
    return %arg0, %c0_i32 : i32, i32
  }
  func.func @transform_1(%arg0: i32) -> (i32, i32) {
    %c0_i32 = arith.constant 0 : i32
    %c0_i32_0 = arith.constant 0 : i32
    return %arg0, %c0_i32 : i32, i32
  }
  func.func @transform_2(%arg0: i32) -> (i32, i32, i32) {
    %c0_i32 = arith.constant 0 : i32
    %c0_i32_0 = arith.constant 0 : i32
    %c0_i32_1 = arith.constant 0 : i32
    %c0_i32_2 = arith.constant 0 : i32
    return %c0_i32, %c0_i32_0, %c0_i32_1 : i32, i32, i32
  }
  func.func @transform_3(%arg0: i32) -> (i32, i32) {
    %c0_i32 = arith.constant 0 : i32
    %c0_i32_0 = arith.constant 0 : i32
    %c0_i32_1 = arith.constant 0 : i32
    return %c0_i32, %c0_i32_0 : i32, i32
  }
  func.func @transform_4(%arg0: i32) -> (i32, i32) {
    %c0_i32 = arith.constant 0 : i32
    %c0_i32_0 = arith.constant 0 : i32
    return %arg0, %c0_i32 : i32, i32
  }
  func.func @transform_5(%arg0: i32) -> (i32, i32) {
    %c0_i32 = arith.constant 0 : i32
    %c0_i32_0 = arith.constant 0 : i32
    return %arg0, %c0_i32 : i32, i32
  }
}

</mosaic_0001>

<llo_original>
// kernel: tpu_custom_call.1
$region0: #{tpu_custom_call.1}
  #allocation0 [shape = 'u32[]', space=smem, size = 0x4, offset = 0x4, fixed_abs, tag = 'smem constant byte address 0x4 - core index']
  #allocation1 [shape = 'u32[72,128]{1,0:T(1,128)}', space=vmem, size = 0x9000, scoped, tag = 'internal scratch']
  %s0 = inlined_call_operand.vmem [shape: f32[8,32], index: 0, kind: input, shape index: {}]
  %s1 = inlined_call_operand.hbm [shape: f32[8,32], index: 1, kind: input, shape index: {}]
  %s2 = inlined_call_operand.hbm [shape: f32[3,3,32], index: 2, kind: input, shape index: {}]
  %s3 = inlined_call_operand.vmem [shape: f32[1,3], index: 3, kind: input, shape index: {}]
  %s4 = inlined_call_operand.vmem [shape: s32[8,1], index: 4, kind: input, shape index: {}]
  %s5 = inlined_call_operand.vmem [shape: f32[8,1], index: 5, kind: output, shape index: {}]
  %s6 = sld [smem:[#allocation0]]
  $region38: #{tpu_custom_call.1} parent=0
    _
  %s8 = ssub.s32 1, %s6
  %s9 = scalar_select 0, %s8, %s6
  $region1: #{tpu_custom_call.1} parent=0
    #allocation2 [shape = 'u8[4096]{0}', space=vmem, size = 0x1000, scoped, tag = 'input window, operand 1, single buffered']
    #allocation3 [shape = 's32[1]{0}', space=sflag, size = 0x4, scoped, tag = 'scoped memory for tpu_custom_call.1']
    #allocation4 [shape = 'u8[6144]{0}', space=vmem, size = 0x1800, scoped, tag = 'input window, operand 2, single buffered']
    #allocation5 [shape = 's32[1]{0}', space=sflag, size = 0x4, scoped, tag = 'scoped memory for tpu_custom_call.1']
    %10 = vsyncpa [#allocation3], 0
    %11 = vsyncpa [#allocation5], 0
    // Predicated region
    $region2: #{tpu_custom_call.1} parent=1 // pred_check
      _
    $region3: #{tpu_custom_call.1} parent=1 // pred_check_branch
      %13 = sbr.rel (0) target = $region5
    $region4: #{tpu_custom_call.1} parent=1 // pred_region
      _
    $region5: #{tpu_custom_call.1} parent=1 // pred_fallthru
      _
    // Predicated region
    $region6: #{tpu_custom_call.1} parent=1 // pred_check
      _
    $region7: #{tpu_custom_call.1} parent=1 // pred_check_branch
      %15 = sbr.rel (0) target = $region9
    $region8: #{tpu_custom_call.1} parent=1 // pred_region
      %17 = vsyncadd [#allocation3], 0
      %s19 = sshll.u32 %s1, 4
      %s20 = int_to_ptr.hbm [resolvable:$true] %s19
      %s21 = sshll.u32 [#allocation2], 4
      %s22 = int_to_ptr.vmem [resolvable:$true] %s21
      %24 = dma.hbm_to_vmem [thread:$0]  %s20, 128, %s22, [#allocation3]
    $region9: #{tpu_custom_call.1} parent=1 // pred_fallthru
      _
    // Predicated region
    $region10: #{tpu_custom_call.1} parent=1 // pred_check
      _
    $region11: #{tpu_custom_call.1} parent=1 // pred_check_branch
      %26 = sbr.rel (0) target = $region13
    $region12: #{tpu_custom_call.1} parent=1 // pred_region
      %28 = vsyncadd [#allocation5], 0
      %s29 = sshll.u32 %s2, 4
      %s30 = int_to_ptr.hbm [resolvable:$true] %s29
      %s31 = sshll.u32 [#allocation4], 4
      %s32 = int_to_ptr.vmem [resolvable:$true] %s31
      %37 = dma.hbm_to_vmem [thread:$0]  %s30, 192, %s32, [#allocation5], 64, 64, 4
    $region13: #{tpu_custom_call.1} parent=1 // pred_fallthru
      _
    // Predicated region
    $region14: #{tpu_custom_call.1} parent=1 // pred_check
      _
    $region15: #{tpu_custom_call.1} parent=1 // pred_check_branch
      %39 = sbr.rel (0) target = $region17
    $region16: #{tpu_custom_call.1} parent=1 // pred_region
      _
    $region17: #{tpu_custom_call.1} parent=1 // pred_fallthru
      _
    // Predicated region
    $region18: #{tpu_custom_call.1} parent=1 // pred_check
      _
    $region19: #{tpu_custom_call.1} parent=1 // pred_check_branch
      %41 = sbr.rel (0) target = $region21
    $region20: #{tpu_custom_call.1} parent=1 // pred_region
      _
    $region21: #{tpu_custom_call.1} parent=1 // pred_fallthru
      _
    // Predicated region
    $region22: #{tpu_custom_call.1} parent=1 // pred_check
      _
    $region23: #{tpu_custom_call.1} parent=1 // pred_check_branch
      %43 = sbr.rel (0) target = $region25
    $region24: #{tpu_custom_call.1} parent=1 // pred_region
      %45 = dma.done [#allocation3], 128
    $region25: #{tpu_custom_call.1} parent=1 // pred_fallthru
      _
    // Predicated region
    $region26: #{tpu_custom_call.1} parent=1 // pred_check
      _
    $region27: #{tpu_custom_call.1} parent=1 // pred_check_branch
      %47 = sbr.rel (0) target = $region29
    $region28: #{tpu_custom_call.1} parent=1 // pred_region
      %49 = dma.done [#allocation5], 192
    $region29: #{tpu_custom_call.1} parent=1 // pred_fallthru
      _
    %v50 = vld [vmem:[%s0] sm:$0xff]
    %v51 = vld [vmem:[#allocation2] sm:$0xff]
    %v52 = vsub.f32 %v50, %v51
    %v53 = vand.u32 2147483647, %v52
    %v54 = vld [vmem:[#allocation4] sm:$0x7]
    %s55 = scalar_lea.vmem [#allocation4], 4
    %v56 = vld [vmem:[%s55] sm:$0x7]
    %vm57 = vcmask 261120
    %v59 = vsel %vm57, %v51, 0
    %v62 = vsel %vm57, %v56, 0
    %64 = vmatpush.xpose.msra.mxu0 0.0
    %65 = vmatpush.xpose.msra.mxu0 0.0
    %66 = vmatpush.xpose.msra.mxu0 0.0
    %67 = vmatpush.xpose.msra.mxu0 0.0
    %68 = vmatpush.xpose.msra.mxu0 0.0
    %69 = vmatpush.xpose.msra.mxu0 0.0
    %70 = vmatpush.xpose.msra.mxu0 0.0
    %71 = vmatpush.xpose.msra.mxu0 0.0
    %72 = vmatpush.xpose.msra.mxu0 0.0
    %73 = vmatpush.xpose.msra.mxu0 0.0
    %74 = vmatpush.xpose.msra.mxu0 0.0
    %75 = vmatpush.xpose.msra.mxu0 0.0
    %76 = vmatpush.xpose.msra.mxu0 0.0
    %77 = vmatpush.xpose.msra.mxu0 0.0
    %78 = vmatpush.xpose.msra.mxu0 0.0
    %79 = vmatpush.xpose.msra.mxu0 %v62
    %80 = vmatmul.f32.gmra.mxu0 %v59
    %v81 = vpop.f32.mrf.mxu0
    %v82 = vadd.f32 0.0, %v81
    %83 = vdwg.mxu0
    %v85 = vsel %vm57, %v50, 0
    %v88 = vsel %vm57, %v54, 0
    %90 = vmatpush.xpose.msra.mxu0 0.0
    %91 = vmatpush.xpose.msra.mxu0 0.0
    %92 = vmatpush.xpose.msra.mxu0 0.0
    %93 = vmatpush.xpose.msra.mxu0 0.0
    %94 = vmatpush.xpose.msra.mxu0 0.0
    %95 = vmatpush.xpose.msra.mxu0 0.0
    %96 = vmatpush.xpose.msra.mxu0 0.0
    %97 = vmatpush.xpose.msra.mxu0 0.0
    %98 = vmatpush.xpose.msra.mxu0 0.0
    %99 = vmatpush.xpose.msra.mxu0 0.0
    %100 = vmatpush.xpose.msra.mxu0 0.0
    %101 = vmatpush.xpose.msra.mxu0 0.0
    %102 = vmatpush.xpose.msra.mxu0 0.0
    %103 = vmatpush.xpose.msra.mxu0 0.0
    %104 = vmatpush.xpose.msra.mxu0 0.0
    %105 = vmatpush.xpose.msra.mxu0 %v88
    %106 = vmatmul.f32.gmra.mxu0 %v85
    %v107 = vpop.f32.mrf.mxu0
    %v108 = vadd.f32 %v82, %v107
    %109 = vdwg.mxu0
    %s110 = scalar_lea.vmem [#allocation4], 8
    %v111 = vld [vmem:[%s110] sm:$0x7]
    %v113 = vsel %vm57, %v53, 0
    %v116 = vsel %vm57, %v111, 0
    %118 = vmatpush.xpose.msra.mxu0 0.0
    %119 = vmatpush.xpose.msra.mxu0 0.0
    %120 = vmatpush.xpose.msra.mxu0 0.0
    %121 = vmatpush.xpose.msra.mxu0 0.0
    %122 = vmatpush.xpose.msra.mxu0 0.0
    %123 = vmatpush.xpose.msra.mxu0 0.0
    %124 = vmatpush.xpose.msra.mxu0 0.0
    %125 = vmatpush.xpose.msra.mxu0 0.0
    %126 = vmatpush.xpose.msra.mxu0 0.0
    %127 = vmatpush.xpose.msra.mxu0 0.0
    %128 = vmatpush.xpose.msra.mxu0 0.0
    %129 = vmatpush.xpose.msra.mxu0 0.0
    %130 = vmatpush.xpose.msra.mxu0 0.0
    %131 = vmatpush.xpose.msra.mxu0 0.0
    %132 = vmatpush.xpose.msra.mxu0 0.0
    %133 = vmatpush.xpose.msra.mxu0 %v116
    %134 = vmatmul.f32.gmra.mxu0 %v113
    %v135 = vpop.f32.mrf.mxu0
    %v136 = vadd.f32 0.0, %v135
    %137 = vdwg.mxu0
    %v138 = vadd.f32 %v108, %v136
    %v139 = vld [vmem:[%s3] sm:$0x1]
    %v141 = vperm.slane %v139, 0
    %v143 = vadd.f32 %v138, %v141
    %vm144 = vcmask 23552
    %v145 = vsel %vm144, %v143, -inf
    %146 = vmax.xlane.f32.xlu0 %v145
    %v147 = vpop.xlane.xlu0 %146
    %v148 = vsub.f32 %v143, %v147
    %v149 = vmul.f32 %v148, 1.442695
    %v150 = vpow.pop %v149
    %v151 = vsel %vm144, %v150, 0.0
    %152 = vadd.xlane.f32.xlu0 %v151
    %v153 = vpop.xlane.xlu0 %152
    %v154 = vlog2.pop %v153
    %v155 = vmul.f32 %v154, 0.6931472
    %v156 = vadd.f32 %v147, %v155
    %v157 = vlaneseq
    %v158 = vand.u32 %v157, 127
    %v159 = vld [vmem:[%s4] sm:$0xff]
    %160 = vset.pattern.permute.xlu0 0
    %161 = vperm.xlu0 %160, %v159
    %v162 = vpop.permute.xlu0 %161
    %vm163 = vcmp.eq.s32.totalorder %v158, %v162
    %v164 = vsel %vm163, %v143, 0.0
    %v165 = vsel %vm144, %v164, 0.0
    %166 = vadd.xlane.f32.xlu0 %v165
    %v167 = vpop.xlane.xlu0 %166
    %v168 = vsub.f32 %v156, %v167
    %v169 = vlaneseq
    %v170 = vshrl.u32 %v169, 7
    %s171 = smul.u32 0, 8
    %v172 = vstv %s171
    %v173 = vadd.s32 %v170, %v172
    %vm174 = vcmp.lt.s32.totalorder %v173, 8
    %v175 = vsel %vm174, %v168, 0.0
    %vm176 = vcmask 7168
    %177 = vst.msk [vmem:[%s5] sm:$0xff] %vm176, %v175
    // Predicated region
    $region30: #{tpu_custom_call.1} parent=1 // pred_check
      _
    $region31: #{tpu_custom_call.1} parent=1 // pred_check_branch
      %179 = sbr.rel (0) target = $region33
    $region32: #{tpu_custom_call.1} parent=1 // pred_region
      _
    $region33: #{tpu_custom_call.1} parent=1 // pred_fallthru
      _
    // Predicated region
    $region34: #{tpu_custom_call.1} parent=1 // pred_check
      _
    $region35: #{tpu_custom_call.1} parent=1 // pred_check_branch
      %181 = sbr.rel (0) target = $region37
    $region36: #{tpu_custom_call.1} parent=1 // pred_region
      _
    $region37: #{tpu_custom_call.1} parent=1 // pred_fallthru
      _
    %182 = vsyncpa [#allocation3], 1
    %183 = vsyncpa [#allocation5], 1

</llo_original>
